<compile_context>
chip_gen: v6e
topology: v6e:2x2x1
jax: 0.10.0
libtpu: 0.0.40
codegen_flags: <defaults>
</compile_context>

<pallas_src>
import functools
import math

import jax
import jax.numpy as jnp
from jax import lax
from jax.experimental import pallas as pl
from jax.experimental.pallas import tpu as pltpu


# ----------------------------------------------------------------------------
# tile helper: largest `align`-multiple <= target that divides `dim`,
# else the full dim (keeps the (8,128) BlockSpec rule satisfied).
# ----------------------------------------------------------------------------
def _pick_tile(dim, target, align):
    if dim <= target:
        return dim
    t = (target // align) * align
    while t >= align:
        if dim % t == 0:
            return t
        t -= align
    return dim


# ----------------------------------------------------------------------------
# Kernel 1: tiled dense linear  y = x @ W + b   (K axis = reduction)
# ----------------------------------------------------------------------------
def _linear_kernel(x_ref, w_ref, b_ref, o_ref, acc_ref):
    @pl.when(pl.program_id(2) == 0)
    def _init():
        acc_ref[...] = jnp.zeros_like(acc_ref)

    acc_ref[...] += jnp.dot(x_ref[...], w_ref[...],
                            preferred_element_type=jnp.float32)

    @pl.when(pl.program_id(2) == pl.num_programs(2) - 1)
    def _store():
        o_ref[...] = (acc_ref[...] + b_ref[...]).astype(o_ref.dtype)


def pallas_linear(x, w, b, *, tm=256, tn=512, tk=512):
    """x: (M, K), w: (K, N) input-major (no wrapper transpose), b: (N,) -> (M, N)."""
    m, kdim = x.shape
    n = w.shape[1]
    tm = _pick_tile(m, tm, 8)
    tn = _pick_tile(n, tn, 128)
    tk = _pick_tile(kdim, tk, 128)
    grid = (m // tm, n // tn, kdim // tk)
    b2 = b.reshape(1, n)
    return pl.pallas_call(
        _linear_kernel,
        out_shape=jax.ShapeDtypeStruct((m, n), jnp.float32),
        grid_spec=pltpu.PrefetchScalarGridSpec(
            num_scalar_prefetch=0,
            grid=grid,
            in_specs=[
                pl.BlockSpec((tm, tk), lambda i, j, k: (i, k)),
                pl.BlockSpec((tk, tn), lambda i, j, k: (k, j)),
                pl.BlockSpec((1, tn), lambda i, j, k: (0, j)),
            ],
            out_specs=pl.BlockSpec((tm, tn), lambda i, j, k: (i, j)),
            scratch_shapes=[pltpu.VMEM((tm, tn), jnp.float32)],
        ),
        compiler_params=pltpu.CompilerParams(
            dimension_semantics=("parallel", "parallel", "arbitrary")),
    )(x, w, b2)


# ----------------------------------------------------------------------------
# Kernel 2: multi-head scaled-dot-product attention (heads packed on features)
# ----------------------------------------------------------------------------
def _mha_kernel(q_ref, k_ref, v_ref, o_ref, *, h, d_k, d_v, scale):
    # q_ref: (1, tq, h*d_k)   k_ref: (1, Lk, h*d_k)   v_ref: (1, Lk, h*d_v)
    q = q_ref[0] * scale          # fold 1/sqrt(d_k) into Q (tq x h*d_k, not S x S)
    k = k_ref[0]
    v = v_ref[0]

    outs = []
    for hi in range(h):           # h is a small static Python int -> unrolled
        qh = q[:, hi * d_k:(hi + 1) * d_k]
        kh = k[:, hi * d_k:(hi + 1) * d_k]
        vh = v[:, hi * d_v:(hi + 1) * d_v]

        # scores = Q @ K^T without materializing K^T (contract last dims).
        s = lax.dot_general(qh, kh, (((1,), (1,)), ((), ())),
                            preferred_element_type=jnp.float32)
        s = s - jnp.max(s, axis=-1, keepdims=True)
        e = jnp.exp(s)
        alpha = e * pl.reciprocal(jnp.sum(e, axis=-1, keepdims=True), approx=True)

        outs.append(jnp.dot(alpha, vh, preferred_element_type=jnp.float32))

    # single lane-dense store of the whole (tq, h*d_v) tile
    o_ref[0] = jnp.concatenate(outs, axis=-1).astype(o_ref.dtype)


def pallas_mha_attention(q, k, v, *, h, d_k, d_v, tq=256):
    """q: (B, Lq, h*d_k), k: (B, Lk, h*d_k), v: (B, Lk, h*d_v) -> (B, Lq, h*d_v)."""
    b_sz, lq, _ = q.shape
    lk = k.shape[1]
    tq = _pick_tile(lq, tq, 8)
    kern = functools.partial(_mha_kernel, h=h, d_k=d_k, d_v=d_v,
                             scale=1.0 / math.sqrt(float(d_k)))
    return pl.pallas_call(
        kern,
        out_shape=jax.ShapeDtypeStruct((b_sz, lq, h * d_v), jnp.float32),
        grid_spec=pltpu.PrefetchScalarGridSpec(
            num_scalar_prefetch=0,
            grid=(b_sz, lq // tq),
            in_specs=[
                pl.BlockSpec((1, tq, h * d_k), lambda b, qb: (b, qb, 0)),
                pl.BlockSpec((1, lk, h * d_k), lambda b, qb: (b, 0, 0)),
                pl.BlockSpec((1, lk, h * d_v), lambda b, qb: (b, 0, 0)),
            ],
            out_specs=pl.BlockSpec((1, tq, h * d_v), lambda b, qb: (b, qb, 0)),
        ),
        compiler_params=pltpu.CompilerParams(
            dimension_semantics=("parallel", "parallel")),
    )(q, k, v)


# ----------------------------------------------------------------------------
# Module wrapper
# ----------------------------------------------------------------------------
class MultiHeadAttentionPallas:
    """Pallas/TPU port of the PyTorch MultiHeadAttention forward (mask=None path)."""

    def __init__(self, h, d_model, len_q, len_k, d_k, d_v, key):
        self.h, self.d_model = h, d_model
        self.len_q, self.len_k = len_q, len_k
        self.d_k, self.d_v = d_k, d_v
        self.out_dim = h * d_v
        ks = jax.random.split(key, 6)

        def xavier(kk, fan_in, fan_out):
            bound = math.sqrt(6.0 / (fan_in + fan_out))
            # stored input-major (fan_in, fan_out): kernel needs no transpose
            return jax.random.uniform(kk, (fan_in, fan_out), jnp.float32,
                                      -bound, bound)

        self.Wq = xavier(ks[0], d_model, h * d_k)
        self.Wk = xavier(ks[1], d_model, h * d_k)
        self.Wv = xavier(ks[2], d_model, h * d_v)
        bb = 1.0 / math.sqrt(float(d_model))
        self.bq = jax.random.uniform(ks[3], (h * d_k,), jnp.float32, -bb, bb)
        self.bk = jax.random.uniform(ks[4], (h * d_k,), jnp.float32, -bb, bb)
        self.bv = jax.random.uniform(ks[5], (h * d_v,), jnp.float32, -bb, bb)

    def __call__(self, Q, K, V, mask=None):
        # TODO(synk): mask != None branch (masked_fill with -1e9) not implemented;
        # only the default mask=None path of the reference forward is covered.
        B = Q.shape[0]

        # Q/K/V are distinct inputs here, so a single fused QKV matmul is not
        # valid; each projection uses the tiled K-reduction linear kernel.
        q = pallas_linear(Q.reshape(B * self.len_q, self.d_model), self.Wq, self.bq)
        k = pallas_linear(K.reshape(B * self.len_k, self.d_model), self.Wk, self.bk)
        v = pallas_linear(V.reshape(B * self.len_k, self.d_model), self.Wv, self.bv)

        q = q.reshape(B, self.len_q, self.h * self.d_k)
        k = k.reshape(B, self.len_k, self.h * self.d_k)
        v = v.reshape(B, self.len_k, self.h * self.d_v)

        # heads stay packed along the feature axis -> no HBM split/merge transposes
        return pallas_mha_attention(q, k, v, h=self.h, d_k=self.d_k, d_v=self.d_v)


# ----------------------------------------------------------------------------
# Pure-JAX reference (mirrors the PyTorch forward with mask=None)
# ----------------------------------------------------------------------------
def reference(mod, Q, K, V):
    B = Q.shape[0]
    q = (Q @ mod.Wq + mod.bq).reshape(B, mod.len_q, mod.h, mod.d_k).transpose(0, 2, 1, 3)
    k = (K @ mod.Wk + mod.bk).reshape(B, mod.len_k, mod.h, mod.d_k).transpose(0, 2, 1, 3)
    v = (V @ mod.Wv + mod.bv).reshape(B, mod.len_k, mod.h, mod.d_v).transpose(0, 2, 1, 3)
    A = jnp.einsum('bhqd,bhkd->bhqk', q, k) / math.sqrt(float(mod.d_k))
    alpha = jax.nn.softmax(A, axis=-1)
    out = jnp.einsum('bhqk,bhkd->bhqd', alpha, v)
    return out.transpose(0, 2, 1, 3).reshape(B, mod.len_q, mod.h * mod.d_v)


if __name__ == "__main__":
    key = jax.random.PRNGKey(0)
    k_mod, k_q, k_k, k_v = jax.random.split(key, 4)

    B, h, d_model, len_q, len_k, d_k, d_v = 2, 4, 32, 8, 8, 8, 8
    mod = MultiHeadAttentionPallas(h, d_model, len_q, len_k, d_k, d_v, k_mod)

    Q = jax.random.normal(k_q, (B, len_q, d_model), jnp.float32)
    K = jax.random.normal(k_k, (B, len_k, d_model), jnp.float32)
    V = jax.random.normal(k_v, (B, len_k, d_model), jnp.float32)

    out = mod(Q, K, V)
    jax.block_until_ready(out)

    ref = reference(mod, Q, K, V)
    assert out.shape == (B, len_q, h * d_v)
    assert jnp.allclose(out, ref, atol=2e-3, rtol=2e-3), "mismatch vs reference"

    print("KERNEL_OK")
</pallas_src>

<mosaic_0001>
module attributes {stable_mosaic.version = 11 : i64} {
  func.func @_linear_kernel(%arg0: i32, %arg1: i32, %arg2: i32, %arg3: memref<16x32xf32, #tpu.memory_space<vmem>>, %arg4: memref<32x32xf32, #tpu.memory_space<vmem>>, %arg5: memref<1x32xf32, #tpu.memory_space<vmem>>, %arg6: memref<16x32xf32, #tpu.memory_space<vmem>>, %arg7: memref<16x32xf32, #tpu.memory_space<vmem>>) attributes {dimension_semantics = [#tpu.dimension_semantics<parallel>, #tpu.dimension_semantics<parallel>, #tpu.dimension_semantics<arbitrary>], iteration_bounds = array<i64: 1, 1, 1>, scalar_prefetch = 0 : i64, scratch_operands = 1 : i64, tpu.core_type = #tpu.core_type<tc>, window_params = [{transform_indices = @transform_0, window_bounds = array<i64: 16, 32>}, {transform_indices = @transform_1, window_bounds = array<i64: 32, 32>}, {transform_indices = @transform_2, window_bounds = array<i64: 1, 32>}, {transform_indices = @transform_3, window_bounds = array<i64: 16, 32>}]} {
    %c0_i32 = arith.constant 0 : i32
    %0 = arith.cmpi eq, %arg2, %c0_i32 : i32
    %1 = arith.extui %0 : i1 to i32
    %c0_i32_0 = arith.constant 0 : i32
    %2 = arith.cmpi ne, %1, %c0_i32_0 : i32
    scf.if %2 {
      %cst_10 = arith.constant 0.000000e+00 : f32
      %12 = vector.broadcast %cst_10 : f32 to vector<16x32xf32>
      %c0_11 = arith.constant 0 : index
      %c0_12 = arith.constant 0 : index
      %13 = vector.load %arg7[%c0_11, %c0_12] : memref<16x32xf32, #tpu.memory_space<vmem>>, vector<16x32xf32>
      tpu.vector_store %arg7[%c0_11, %c0_12], %12 {strides = array<i32>} : memref<16x32xf32, #tpu.memory_space<vmem>>, vector<16x32xf32>,
    } else {
    }
    %c0 = arith.constant 0 : index
    %c0_1 = arith.constant 0 : index
    %3 = vector.load %arg7[%c0, %c0_1] : memref<16x32xf32, #tpu.memory_space<vmem>>, vector<16x32xf32>
    %c0_2 = arith.constant 0 : index
    %c0_3 = arith.constant 0 : index
    %4 = vector.load %arg3[%c0_2, %c0_3] : memref<16x32xf32, #tpu.memory_space<vmem>>, vector<16x32xf32>
    %c0_4 = arith.constant 0 : index
    %c0_5 = arith.constant 0 : index
    %5 = vector.load %arg4[%c0_4, %c0_5] : memref<32x32xf32, #tpu.memory_space<vmem>>, vector<32x32xf32>
    %cst = arith.constant dense<0.000000e+00> : vector<16x32xf32>
    %6 = tpu.matmul %4, %5, %cst {dimension_numbers = #tpu.dot_dimension_numbers<[1], [0], [0], [1], [0, 0, 1, 1], [], []>} : vector<16x32xf32>, vector<32x32xf32>, vector<16x32xf32> -> vector<16x32xf32>
    %7 = arith.addf %3, %6 : vector<16x32xf32>
    %c0_6 = arith.constant 0 : index
    %c0_7 = arith.constant 0 : index
    %8 = vector.load %arg7[%c0_6, %c0_7] : memref<16x32xf32, #tpu.memory_space<vmem>>, vector<16x32xf32>
    tpu.vector_store %arg7[%c0_6, %c0_7], %7 {strides = array<i32>} : memref<16x32xf32, #tpu.memory_space<vmem>>, vector<16x32xf32>,
    %c0_i32_8 = arith.constant 0 : i32
    %9 = arith.cmpi eq, %arg2, %c0_i32_8 : i32
    %10 = arith.extui %9 : i1 to i32
    %c0_i32_9 = arith.constant 0 : i32
    %11 = arith.cmpi ne, %10, %c0_i32_9 : i32
    scf.if %11 {
      %c0_10 = arith.constant 0 : index
      %c0_11 = arith.constant 0 : index
      %12 = vector.load %arg7[%c0_10, %c0_11] : memref<16x32xf32, #tpu.memory_space<vmem>>, vector<16x32xf32>
      %c0_12 = arith.constant 0 : index
      %c0_13 = arith.constant 0 : index
      %13 = vector.load %arg5[%c0_12, %c0_13] : memref<1x32xf32, #tpu.memory_space<vmem>>, vector<1x32xf32>
      %14 = vector.broadcast %13 : vector<1x32xf32> to vector<16x32xf32>
      %15 = arith.addf %12, %14 : vector<16x32xf32>
      %c0_14 = arith.constant 0 : index
      %c0_15 = arith.constant 0 : index
      %16 = vector.load %arg6[%c0_14, %c0_15] : memref<16x32xf32, #tpu.memory_space<vmem>>, vector<16x32xf32>
      tpu.vector_store %arg6[%c0_14, %c0_15], %15 {strides = array<i32>} : memref<16x32xf32, #tpu.memory_space<vmem>>, vector<16x32xf32>,
    } else {
    }
    return
  }
  func.func @transform_0(%arg0: i32, %arg1: i32, %arg2: i32) -> (i32, i32) {
    %c0_i32 = arith.constant 0 : i32
    return %arg0, %arg2 : i32, i32
  }
  func.func @transform_1(%arg0: i32, %arg1: i32, %arg2: i32) -> (i32, i32) {
    %c0_i32 = arith.constant 0 : i32
    return %arg2, %arg1 : i32, i32
  }
  func.func @transform_2(%arg0: i32, %arg1: i32, %arg2: i32) -> (i32, i32) {
    %c0_i32 = arith.constant 0 : i32
    %c0_i32_0 = arith.constant 0 : i32
    return %c0_i32, %arg1 : i32, i32
  }
  func.func @transform_3(%arg0: i32, %arg1: i32, %arg2: i32) -> (i32, i32) {
    %c0_i32 = arith.constant 0 : i32
    return %arg0, %arg1 : i32, i32
  }
}

</mosaic_0001>

<llo_original>
// kernel: tpu_custom_call.1
$region0: #{tpu_custom_call.1}
  #allocation0 [shape = 'u32[]', space=smem, size = 0x4, offset = 0x4, fixed_abs, tag = 'smem constant byte address 0x4 - core index']
  #allocation1 [shape = 'u32[144,128]{1,0:T(1,128)}', space=vmem, size = 0x12000, scoped, tag = 'internal scratch']
  #allocation2 [shape = 'f32[16,32]{1,0:T(8,128)}', space=vmem, size = 0x2000, scoped, tag = 'scratch operand']
  %s0 = inlined_call_operand.hbm [shape: f32[16,32], index: 0, kind: input, shape index: {}]
  %s1 = inlined_call_operand.hbm [shape: f32[32,32], index: 1, kind: input, shape index: {}]
  %s2 = inlined_call_operand.vmem [shape: f32[1,32], index: 2, kind: input, shape index: {}]
  %s3 = inlined_call_operand.hbm [shape: f32[16,32], index: 3, kind: output, shape index: {}]
  %s4 = sld [smem:[#allocation0]]
  $region38: #{tpu_custom_call.1} parent=0
    _
  %s6 = ssub.s32 1, %s4
  %s7 = scalar_select 0, %s6, %s4
  $region1: #{tpu_custom_call.1} parent=0
    #allocation3 [shape = 'u8[8192]{0}', space=vmem, size = 0x2000, scoped, tag = 'input window, operand 0, single buffered']
    #allocation4 [shape = 's32[1]{0}', space=sflag, size = 0x4, scoped, tag = 'scoped memory for tpu_custom_call.1']
    #allocation5 [shape = 's32[1]{0}', space=sflag, size = 0x4, scoped, tag = 'scoped memory for tpu_custom_call.1']
    #allocation6 [shape = 'u8[16384]{0}', space=vmem, size = 0x4000, scoped, tag = 'input window, operand 1, single buffered']
    #allocation7 [shape = 's32[1]{0}', space=sflag, size = 0x4, scoped, tag = 'scoped memory for tpu_custom_call.1']
    #allocation8 [shape = 'u8[8192]{0}', space=vmem, size = 0x2000, scoped, tag = 'output window, operand 0, single buffered']
    %8 = vsyncpa [#allocation4], 0
    %9 = vsyncpa [#allocation7], 0
    %10 = vsyncpa [#allocation5], 0
    // Predicated region
    $region2: #{tpu_custom_call.1} parent=1 // pred_check
      _
    $region3: #{tpu_custom_call.1} parent=1 // pred_check_branch
      %12 = sbr.rel (0) target = $region5
    $region4: #{tpu_custom_call.1} parent=1 // pred_region
      %s14 = ssub.s32 256, 256
      %15 = vsyncadd [#allocation4], %s14
      %s16 = sshll.u32 [#allocation3], 4
      %s17 = int_to_ptr.vmem [resolvable:$true] %s16
      %22 = dma.hbm_to_vmem [thread:$0]  %s0, 256, %s17, [#allocation4], 128, 128, 8
    $region5: #{tpu_custom_call.1} parent=1 // pred_fallthru
      _
    // Predicated region
    $region6: #{tpu_custom_call.1} parent=1 // pred_check
      _
    $region7: #{tpu_custom_call.1} parent=1 // pred_check_branch
      %24 = sbr.rel (0) target = $region9
    $region8: #{tpu_custom_call.1} parent=1 // pred_region
      %s26 = ssub.s32 512, 512
      %27 = vsyncadd [#allocation7], %s26
      %s28 = sshll.u32 [#allocation6], 4
      %s29 = int_to_ptr.vmem [resolvable:$true] %s28
      %34 = dma.hbm_to_vmem [thread:$0]  %s1, 512, %s29, [#allocation7], 128, 128, 8
    $region9: #{tpu_custom_call.1} parent=1 // pred_fallthru
      _
    // Predicated region
    $region10: #{tpu_custom_call.1} parent=1 // pred_check
      _
    $region11: #{tpu_custom_call.1} parent=1 // pred_check_branch
      %36 = sbr.rel (0) target = $region13
    $region12: #{tpu_custom_call.1} parent=1 // pred_region
      _
    $region13: #{tpu_custom_call.1} parent=1 // pred_fallthru
      _
    // Predicated region
    $region14: #{tpu_custom_call.1} parent=1 // pred_check
      _
    $region15: #{tpu_custom_call.1} parent=1 // pred_check_branch
      %38 = sbr.rel (0) target = $region17
    $region16: #{tpu_custom_call.1} parent=1 // pred_region
      %39 = dma.done [#allocation4], 256
    $region17: #{tpu_custom_call.1} parent=1 // pred_fallthru
      _
    // Predicated region
    $region18: #{tpu_custom_call.1} parent=1 // pred_check
      _
    $region19: #{tpu_custom_call.1} parent=1 // pred_check_branch
      %41 = sbr.rel (0) target = $region21
    $region20: #{tpu_custom_call.1} parent=1 // pred_region
      %42 = dma.done [#allocation7], 512
    $region21: #{tpu_custom_call.1} parent=1 // pred_fallthru
      _
    %p43 = scmp.eq.s32.totalorder 0, 0
    // Predicated region
    $region22: #{tpu_custom_call.1} parent=1 // pred_check
      %p44 = pneg %p43
    $region23: #{tpu_custom_call.1} parent=1 // pred_check_branch
      %46 = sbr.rel (%p44) target = $region25
    $region24: #{tpu_custom_call.1} parent=1 // pred_region
      %vm47 = vcmask 261120
      %48 = vst.msk [vmem:[#allocation2] sm:$0xff] %vm47, 0.0
      %49 = vst.msk [vmem:[#allocation2 + $0x8] sm:$0xff] %vm47, 0.0
    $region25: #{tpu_custom_call.1} parent=1 // pred_fallthru
      _
    %v50 = vld [vmem:[#allocation2] sm:$0xff]
    %v51 = vld [vmem:[#allocation2 + $0x8] sm:$0xff]
    %v52 = vld [vmem:[#allocation3] sm:$0xff]
    %v53 = vld [vmem:[#allocation3 + $0x8] sm:$0xff]
    %v54 = vld [vmem:[#allocation6] sm:$0xff]
    %v55 = vld [vmem:[#allocation6 + $0x8] sm:$0xff]
    %v56 = vld [vmem:[#allocation6 + $0x10] sm:$0xff]
    %v57 = vld [vmem:[#allocation6 + $0x18] sm:$0xff]
    %vm58 = vcmask 261120
    %v60 = vsel %vm58, %v52, 0
    %v63 = vsel %vm58, %v53, 0
    %65 = vmatprep.subr.mxu0 0.0
    %66 = vmatpush1.msra.mxu0 0.0
    %67 = vmatprep.subr.mxu0 0.0
    %68 = vmatpush1.msra.mxu0 0.0
    %69 = vmatprep.subr.mxu0 0.0
    %70 = vmatpush1.msra.mxu0 0.0
    %71 = vmatprep.subr.mxu0 0.0
    %72 = vmatpush1.msra.mxu0 0.0
    %73 = vmatprep.subr.mxu0 0.0
    %74 = vmatpush1.msra.mxu0 0.0
    %75 = vmatprep.subr.mxu0 0.0
    %76 = vmatpush1.msra.mxu0 0.0
    %77 = vmatprep.subr.mxu0 0.0
    %78 = vmatpush1.msra.mxu0 0.0
    %79 = vmatprep.subr.mxu0 0.0
    %80 = vmatpush1.msra.mxu0 0.0
    %81 = vmatprep.subr.mxu0 0.0
    %82 = vmatpush1.msra.mxu0 0.0
    %83 = vmatprep.subr.mxu0 0.0
    %84 = vmatpush1.msra.mxu0 0.0
    %85 = vmatprep.subr.mxu0 0.0
    %86 = vmatpush1.msra.mxu0 0.0
    %87 = vmatprep.subr.mxu0 0.0
    %88 = vmatpush1.msra.mxu0 0.0
    %89 = vmatprep.subr.mxu0 0.0
    %90 = vmatpush1.msra.mxu0 %v57
    %91 = vmatprep.subr.mxu0 0.0
    %92 = vmatpush1.msra.mxu0 %v56
    %93 = vmatprep.subr.mxu0 0.0
    %94 = vmatpush1.msra.mxu0 %v55
    %95 = vmatprep.subr.mxu0 0.0
    %96 = vmatpush1.msra.mxu0 %v54
    %97 = vmatprep.subr.mxu0 0.0
    %98 = vmatpush2.msra.mxu0 0.0
    %99 = vmatprep.subr.mxu0 0.0
    %100 = vmatpush2.msra.mxu0 0.0
    %101 = vmatprep.subr.mxu0 0.0
    %102 = vmatpush2.msra.mxu0 0.0
    %103 = vmatprep.subr.mxu0 0.0
    %104 = vmatpush2.msra.mxu0 0.0
    %105 = vmatprep.subr.mxu0 0.0
    %106 = vmatpush2.msra.mxu0 0.0
    %107 = vmatprep.subr.mxu0 0.0
    %108 = vmatpush2.msra.mxu0 0.0
    %109 = vmatprep.subr.mxu0 0.0
    %110 = vmatpush2.msra.mxu0 0.0
    %111 = vmatprep.subr.mxu0 0.0
    %112 = vmatpush2.msra.mxu0 0.0
    %113 = vmatprep.subr.mxu0 0.0
    %114 = vmatpush2.msra.mxu0 0.0
    %115 = vmatprep.subr.mxu0 0.0
    %116 = vmatpush2.msra.mxu0 0.0
    %117 = vmatprep.subr.mxu0 0.0
    %118 = vmatpush2.msra.mxu0 0.0
    %119 = vmatprep.subr.mxu0 0.0
    %120 = vmatpush2.msra.mxu0 0.0
    %121 = vmatprep.subr.mxu0 0.0
    %122 = vmatpush2.msra.mxu0 0.0
    %123 = vmatprep.subr.mxu0 0.0
    %124 = vmatpush2.msra.mxu0 0.0
    %125 = vmatprep.subr.mxu0 0.0
    %126 = vmatpush2.msra.mxu0 0.0
    %127 = vmatprep.subr.mxu0 0.0
    %128 = vmatpush2.msra.mxu0 0.0
    %129 = vmatprep.mubr.f32.mxu0 0.0
    %130 = vmatmul.mubr.f32.gmra.mxu0 %v60
    %v131 = vpop.f32.mrf.mxu0
    %v132 = vadd.f32 0.0, %v131
    %v133 = vpop.f32.mrf.mxu0
    %134 = vmatprep.mubr.f32.mxu0 0.0
    %135 = vmatmul.mubr.f32.gmra.mxu0 %v63
    %v136 = vpop.f32.mrf.mxu0
    %v137 = vadd.f32 0.0, %v136
    %v138 = vpop.f32.mrf.mxu0
    %139 = vdwg.mxu0
    %v140 = vadd.f32 %v50, %v132
    %v141 = vadd.f32 %v51, %v137
    %142 = vst.msk [vmem:[#allocation2] sm:$0xff] %vm58, %v140
    %143 = vst.msk [vmem:[#allocation2 + $0x8] sm:$0xff] %vm58, %v141
    // Predicated region
    $region26: #{tpu_custom_call.1} parent=1 // pred_check
      %p144 = pneg %p43
    $region27: #{tpu_custom_call.1} parent=1 // pred_check_branch
      %146 = sbr.rel (%p144) target = $region29
    $region28: #{tpu_custom_call.1} parent=1 // pred_region
      %v147 = vld [vmem:[#allocation2] sm:$0xff]
      %v148 = vld [vmem:[#allocation2 + $0x8] sm:$0xff]
      %v149 = vld [vmem:[%s2] sm:$0x1]
      %v151 = vlaneseq
      %v152 = vshrl.u32 %v151, 7
      %v153 = vsub.s32 0, %v152
      %v154 = vrot.slane %v149, %v153
      %v156 = vadd.f32 %v147, %v154
      %v157 = vadd.f32 %v148, %v154
      %158 = vst.msk [vmem:[#allocation8] sm:$0xff] %vm58, %v156
      %159 = vst.msk [vmem:[#allocation8 + $0x8] sm:$0xff] %vm58, %v157
    $region29: #{tpu_custom_call.1} parent=1 // pred_fallthru
      _
    // Predicated region
    $region30: #{tpu_custom_call.1} parent=1 // pred_check
      _
    $region31: #{tpu_custom_call.1} parent=1 // pred_check_branch
      %161 = sbr.rel (0) target = $region33
    $region32: #{tpu_custom_call.1} parent=1 // pred_region
      %s163 = ssub.s32 256, 256
      %164 = vsyncadd [#allocation5], %s163
      %s165 = sshll.u32 [#allocation8], 4
      %s166 = int_to_ptr.vmem [resolvable:$true] %s165
      %171 = dma.vmem_to_hbm [thread:$0]  %s166, 256, %s3, [#allocation5], 128, 128, 8
    $region33: #{tpu_custom_call.1} parent=1 // pred_fallthru
      _
    // Predicated region
    $region34: #{tpu_custom_call.1} parent=1 // pred_check
      _
    $region35: #{tpu_custom_call.1} parent=1 // pred_check_branch
      %173 = sbr.rel (0) target = $region37
    $region36: #{tpu_custom_call.1} parent=1 // pred_region
      %174 = dma.done [#allocation5], 256
    $region37: #{tpu_custom_call.1} parent=1 // pred_fallthru
      _
    %175 = vsyncpa [#allocation4], 1
    %176 = vsyncpa [#allocation7], 1
    %177 = vsyncpa [#allocation5], 1

</llo_original>
